<compile_context>
chip_gen: v7x
topology: tpu7x:2x2x1
jax: 0.10.0
libtpu: 0.0.40
codegen_flags: <defaults>
</compile_context>

<pallas_src>
import functools

import jax
import jax.numpy as jnp
from jax.experimental import pallas as pl
from jax.experimental.pallas import tpu as pltpu

LN_EPS = 1e-5  # torch.nn.LayerNorm default


def _round_up(n: int, m: int) -> int:
    return ((n + m - 1) // m) * m


def _vmem_capacity_bytes() -> int:
    """Per-TensorCore VMEM capacity; conservative v7x default if query fails."""
    try:
        return int(pltpu.get_tpu_info().vmem_capacity_bytes)
    except Exception:
        return 64 * 1024 * 1024


def classifier_head_kernel(x_ref, gamma_ref, beta_ref, w_ref, b_ref, o_ref,
                           acc_ref, *, inv_seq_len: float, seq_rem: int):
    # x_ref: (TB, TS, D)   gamma/beta: (1, D)   w: (D, Cp)   b: (1, Cp)
    # o_ref: (TB, Cp)      acc_ref (scratch): (TB, D) f32
    s = pl.program_id(1)
    n_s = pl.num_programs(1)

    @pl.when(s == 0)
    def _init():
        acc_ref[...] = jnp.zeros_like(acc_ref)

    if seq_rem == 0:
        # Every sequence tile is full: plain streaming accumulate (f32 acc).
        acc_ref[...] += jnp.sum(x_ref[...], axis=1, dtype=jnp.float32)
    else:
        # S % TS != 0: mask the out-of-range rows of the last tile in-kernel
        # instead of padding x in the wrapper (saves a full HBM pass over x).
        @pl.when(s != n_s - 1)
        def _full_tile():
            acc_ref[...] += jnp.sum(x_ref[...], axis=1, dtype=jnp.float32)

        @pl.when(s == n_s - 1)
        def _partial_tile():
            pos = jax.lax.broadcasted_iota(jnp.int32, x_ref.shape, 1)
            xv = jnp.where(pos < seq_rem, x_ref[...], 0.0)
            acc_ref[...] += jnp.sum(xv, axis=1, dtype=jnp.float32)

    @pl.when(s == n_s - 1)
    def _finalize():
        # Mean pool: apply 1/S once (true S, independent of tiling).
        pooled = acc_ref[...] * inv_seq_len                      # (TB, D) f32

        # LayerNorm over features (biased variance, torch semantics).
        # Note: garbage rows of a partial batch tile may produce non-finite
        # values here; they are never written back (out-of-bounds store rows
        # are dropped), so this is intentionally left unguarded.
        mu = jnp.mean(pooled, axis=-1, keepdims=True)
        centered = pooled - mu
        var = jnp.mean(centered * centered, axis=-1, keepdims=True)
        inv = jax.lax.rsqrt(var + LN_EPS)
        y = centered * inv * gamma_ref[...].astype(jnp.float32) \
            + beta_ref[...].astype(jnp.float32)

        # Dropout: eval-mode identity (no-op).

        # Linear on the MXU fast path: cast y down to W's dtype (bf16 W stays
        # bf16), accumulate in f32.  (TB, D) @ (D, Cp) + (1, Cp).
        logits = jnp.dot(y.astype(w_ref.dtype), w_ref[...],
                         preferred_element_type=jnp.float32)
        o_ref[...] = (logits + b_ref[...].astype(jnp.float32)).astype(o_ref.dtype)


def classifier_head(x, gamma, beta, fc_weight, fc_bias, *, ts=None):
    """ClassifierHead forward.

    Args:
      x:         (B, S, D) activations (f32 or bf16; bf16 halves HBM traffic).
      gamma/beta:(D,) LayerNorm affine params.
      fc_weight: (num_classes, D) -- torch nn.Linear layout; transposed here.
      fc_bias:   (num_classes,)
      ts:        optional sequence-tile override (testing / tuning).
    Returns: (B, num_classes) float32.
    """
    B, S, D = x.shape
    C, D_w = fc_weight.shape
    assert D_w == D, "fc_weight must be (num_classes, d_model) (torch layout)"

    # Kernel consumes W as (D, C); pad the class dim to 128 for lane-dense stores.
    w = fc_weight.T
    C_pad = _round_up(C, 128)
    w_p = jnp.pad(w, ((0, 0), (0, C_pad - C))) if C_pad != C else w
    b2 = fc_bias.reshape(1, C)
    b_p = jnp.pad(b2, ((0, 0), (0, C_pad - C))) if C_pad != C else b2
    gamma2 = gamma.reshape(1, D)
    beta2 = beta.reshape(1, D)

    x_itemsize = x.dtype.itemsize
    w_itemsize = w_p.dtype.itemsize
    pack = {4: 8, 2: 16, 1: 32}.get(x_itemsize, 8)   # dtype-dependent sublane pack

    # ---- generation-aware VMEM budgets ----
    cap = _vmem_capacity_bytes()
    vmem_limit = (cap * 3) // 4          # ~48 MiB on v7x (64), ~96 MiB on v5e/v6e (128)

    # ---- batch tile ----
    if B <= 8:
        TB = B                            # == full dim (satisfies sublane rule)
    else:
        TB = min(128, _round_up(B, 8))
        if pl.cdiv(B, TB) < 2:            # keep >= 2 batch tiles so both v7x TCs get work
            TB = _round_up(pl.cdiv(B, 2), 8)

    # ---- x streaming budget & sequence tile ----
    resident = (2 * (D * C_pad + C_pad + 2 * D) * w_itemsize  # params (worst case 2x buffered)
                + 2 * TB * C_pad * 4                          # output (double-buffered, f32)
                + TB * D * 4)                                 # f32 accumulator scratch
    headroom = 4 * 1024 * 1024
    x_budget = max(2 * 1024 * 1024, min(cap // 4, vmem_limit - resident - headroom))

    def _ts_for(tb):
        rows = (x_budget // 2) // max(1, tb * D * x_itemsize)  # 2 = double-buffered x
        return max(pack, (rows // pack) * pack)

    if ts is not None:
        assert ts == S or (ts < S and ts % pack == 0), \
            "ts override must equal S or be a sublane-pack multiple"
        TS = ts
    else:
        TS = min(S, _ts_for(TB))
        while 2 * TB * TS * D * x_itemsize > x_budget and TB > 8:
            TB = max(8, _round_up(TB // 2, 8))
            TS = min(S, _ts_for(TB))

    grid = (pl.cdiv(B, TB), pl.cdiv(S, TS))
    seq_rem = S % TS

    kernel = functools.partial(classifier_head_kernel,
                               inv_seq_len=1.0 / S, seq_rem=seq_rem)

    def _call(single_buffer_params: bool):
        if single_buffer_params:
            # Constant block index -> no pipelining needed; single-buffer the
            # resident params to halve their VMEM footprint (matters on v7x).
            def param_spec(shape):
                return pl.BlockSpec(shape, lambda bi, si: (0,) * len(shape),
                                    pipeline_mode=pl.Buffered(1))
        else:
            def param_spec(shape):
                return pl.BlockSpec(shape, lambda bi, si: (0,) * len(shape))

        return pl.pallas_call(
            kernel,
            out_shape=jax.ShapeDtypeStruct((B, C_pad), jnp.float32),
            grid_spec=pltpu.PrefetchScalarGridSpec(
                num_scalar_prefetch=0,
                grid=grid,
                in_specs=[
                    # streamed activations (double-buffered by default)
                    pl.BlockSpec((TB, TS, D), lambda bi, si: (bi, si, 0)),
                    # resident parameters
                    param_spec((1, D)),
                    param_spec((1, D)),
                    param_spec((D, C_pad)),
                    param_spec((1, C_pad)),
                ],
                out_specs=pl.BlockSpec((TB, C_pad), lambda bi, si: (bi, 0)),
                scratch_shapes=[pltpu.VMEM((TB, D), jnp.float32)],
            ),
            compiler_params=pltpu.CompilerParams(
                dimension_semantics=("parallel", "arbitrary"),
                vmem_limit_bytes=int(vmem_limit),
            ),
        )(x, gamma2, beta2, w_p, b_p)

    try:
        out_full = jax.block_until_ready(_call(True))
    except Exception:
        # pl.Buffered(1) not supported on this jax/backend combination:
        # fall back to default double buffering of the resident params.
        out_full = jax.block_until_ready(_call(False))

    return out_full[:, :C]


def reference(x, gamma, beta, fc_weight, fc_bias):
    pooled = jnp.mean(x.astype(jnp.float32), axis=1)
    mu = jnp.mean(pooled, axis=-1, keepdims=True)
    var = jnp.mean((pooled - mu) ** 2, axis=-1, keepdims=True)
    y = (pooled - mu) * jax.lax.rsqrt(var + LN_EPS) * gamma + beta
    return y @ fc_weight.T.astype(jnp.float32) + fc_bias


if __name__ == "__main__":
    key = jax.random.PRNGKey(0)
    B, S, D, C = 2, 8, 32, 8

    k_x, k_w, k_b, k_x2 = jax.random.split(key, 4)
    x = jax.random.normal(k_x, (B, S, D), dtype=jnp.float32)

    # Deterministic synthetic parameters:
    # LayerNorm gamma=1, beta=0 (torch init); Linear weight in torch (C, D) layout.
    gamma = jnp.ones((D,), dtype=jnp.float32)
    beta = jnp.zeros((D,), dtype=jnp.float32)
    fc_w = jax.random.normal(k_w, (C, D), dtype=jnp.float32) * 0.02
    fc_b = jax.random.normal(k_b, (C,), dtype=jnp.float32) * 0.02

    out = jax.block_until_ready(classifier_head(x, gamma, beta, fc_w, fc_b))
    ref = reference(x, gamma, beta, fc_w, fc_b)
    assert out.shape == (B, C)
    assert jnp.allclose(out, ref, atol=1e-4, rtol=1e-4), "mismatch vs reference"

    # Second check: S not a multiple of the sequence tile -> exercises the
    # in-kernel masked last-tile path (no wrapper-side padding of x).
    S2 = 20
    x2 = jax.random.normal(k_x2, (B, S2, D), dtype=jnp.float32)
    out2 = jax.block_until_ready(classifier_head(x2, gamma, beta, fc_w, fc_b, ts=8))
    ref2 = reference(x2, gamma, beta, fc_w, fc_b)
    assert out2.shape == (B, C)
    assert jnp.allclose(out2, ref2, atol=1e-4, rtol=1e-4), "mismatch vs reference (masked path)"

    print("KERNEL_OK")
</pallas_src>

<mosaic_0001>
module attributes {stable_mosaic.version = 11 : i64} {
  func.func @classifier_head_kernel(%arg0: i32, %arg1: i32, %arg2: memref<2x8x32xf32, #tpu.memory_space<vmem>>, %arg3: memref<1x32xf32, #tpu.memory_space<vmem>>, %arg4: memref<1x32xf32, #tpu.memory_space<vmem>>, %arg5: memref<32x128xf32, #tpu.memory_space<vmem>>, %arg6: memref<1x128xf32, #tpu.memory_space<vmem>>, %arg7: memref<2x128xf32, #tpu.memory_space<vmem>>, %arg8: memref<2x32xf32, #tpu.memory_space<vmem>>) attributes {dimension_semantics = [#tpu.dimension_semantics<parallel>, #tpu.dimension_semantics<arbitrary>], iteration_bounds = array<i64: 1, 1>, scalar_prefetch = 0 : i64, scratch_operands = 1 : i64, tpu.core_type = #tpu.core_type<tc>, window_params = [{transform_indices = @transform_0, window_bounds = array<i64: 2, 8, 32>}, {pipeline_mode = #tpu.pipeline_mode<synchronous>, transform_indices = @transform_1, window_bounds = array<i64: 1, 32>}, {pipeline_mode = #tpu.pipeline_mode<synchronous>, transform_indices = @transform_2, window_bounds = array<i64: 1, 32>}, {pipeline_mode = #tpu.pipeline_mode<synchronous>, transform_indices = @transform_3, window_bounds = array<i64: 32, 128>}, {pipeline_mode = #tpu.pipeline_mode<synchronous>, transform_indices = @transform_4, window_bounds = array<i64: 1, 128>}, {transform_indices = @transform_5, window_bounds = array<i64: 2, 128>}]} {
    %c0_i32 = arith.constant 0 : i32
    %0 = arith.cmpi eq, %arg1, %c0_i32 : i32
    %1 = arith.extui %0 : i1 to i32
    %c0_i32_0 = arith.constant 0 : i32
    %2 = arith.cmpi ne, %1, %c0_i32_0 : i32
    scf.if %2 {
      %cst_9 = arith.constant 0.000000e+00 : f32
      %11 = vector.broadcast %cst_9 : f32 to vector<2x32xf32>
      %c0_10 = arith.constant 0 : index
      %c0_11 = arith.constant 0 : index
      %12 = vector.load %arg8[%c0_10, %c0_11] : memref<2x32xf32, #tpu.memory_space<vmem>>, vector<2x32xf32>
      tpu.vector_store %arg8[%c0_10, %c0_11], %11 {strides = array<i32>} : memref<2x32xf32, #tpu.memory_space<vmem>>, vector<2x32xf32>,
    } else {
    }
    %c0 = arith.constant 0 : index
    %c0_1 = arith.constant 0 : index
    %3 = vector.load %arg8[%c0, %c0_1] : memref<2x32xf32, #tpu.memory_space<vmem>>, vector<2x32xf32>
    %c0_2 = arith.constant 0 : index
    %c0_3 = arith.constant 0 : index
    %c0_4 = arith.constant 0 : index
    %4 = vector.load %arg2[%c0_2, %c0_3, %c0_4] : memref<2x8x32xf32, #tpu.memory_space<vmem>>, vector<2x8x32xf32>
    %cst = arith.constant dense<0.000000e+00> : vector<2x32xf32>
    %5 = vector.multi_reduction <add>, %4, %cst [1] : vector<2x8x32xf32> to vector<2x32xf32>
    %6 = arith.addf %3, %5 : vector<2x32xf32>
    %c0_5 = arith.constant 0 : index
    %c0_6 = arith.constant 0 : index
    %7 = vector.load %arg8[%c0_5, %c0_6] : memref<2x32xf32, #tpu.memory_space<vmem>>, vector<2x32xf32>
    tpu.vector_store %arg8[%c0_5, %c0_6], %6 {strides = array<i32>} : memref<2x32xf32, #tpu.memory_space<vmem>>, vector<2x32xf32>,
    %c0_i32_7 = arith.constant 0 : i32
    %8 = arith.cmpi eq, %arg1, %c0_i32_7 : i32
    %9 = arith.extui %8 : i1 to i32
    %c0_i32_8 = arith.constant 0 : i32
    %10 = arith.cmpi ne, %9, %c0_i32_8 : i32
    scf.if %10 {
      %c0_9 = arith.constant 0 : index
      %c0_10 = arith.constant 0 : index
      %11 = vector.load %arg8[%c0_9, %c0_10] : memref<2x32xf32, #tpu.memory_space<vmem>>, vector<2x32xf32>
      %cst_11 = arith.constant 1.250000e-01 : f32
      %12 = vector.broadcast %cst_11 : f32 to vector<2x32xf32>
      %13 = arith.mulf %11, %12 : vector<2x32xf32>
      %cst_12 = arith.constant dense<0.000000e+00> : vector<2xf32>
      %14 = vector.multi_reduction <add>, %13, %cst_12 [1] : vector<2x32xf32> to vector<2xf32>
      %15 = vector.shape_cast %14 : vector<2xf32> to vector<2x1xf32>
      %cst_13 = arith.constant 3.200000e+01 : f32
      %16 = vector.broadcast %cst_13 : f32 to vector<2x1xf32>
      %17 = arith.divf %15, %16 : vector<2x1xf32>
      %18 = vector.broadcast %17 : vector<2x1xf32> to vector<2x32xf32>
      %19 = arith.subf %13, %18 : vector<2x32xf32>
      %20 = arith.mulf %19, %19 : vector<2x32xf32>
      %cst_14 = arith.constant dense<0.000000e+00> : vector<2xf32>
      %21 = vector.multi_reduction <add>, %20, %cst_14 [1] : vector<2x32xf32> to vector<2xf32>
      %22 = vector.shape_cast %21 : vector<2xf32> to vector<2x1xf32>
      %cst_15 = arith.constant 3.200000e+01 : f32
      %23 = vector.broadcast %cst_15 : f32 to vector<2x1xf32>
      %24 = arith.divf %22, %23 : vector<2x1xf32>
      %cst_16 = arith.constant 9.99999974E-6 : f32
      %25 = vector.broadcast %cst_16 : f32 to vector<2x1xf32>
      %26 = arith.addf %24, %25 : vector<2x1xf32>
      %27 = math.rsqrt %26 : vector<2x1xf32>
      %28 = vector.broadcast %27 : vector<2x1xf32> to vector<2x32xf32>
      %29 = arith.mulf %19, %28 : vector<2x32xf32>
      %c0_17 = arith.constant 0 : index
      %c0_18 = arith.constant 0 : index
      %30 = vector.load %arg3[%c0_17, %c0_18] : memref<1x32xf32, #tpu.memory_space<vmem>>, vector<1x32xf32>
      %31 = vector.broadcast %30 : vector<1x32xf32> to vector<2x32xf32>
      %32 = arith.mulf %29, %31 : vector<2x32xf32>
      %c0_19 = arith.constant 0 : index
      %c0_20 = arith.constant 0 : index
      %33 = vector.load %arg4[%c0_19, %c0_20] : memref<1x32xf32, #tpu.memory_space<vmem>>, vector<1x32xf32>
      %34 = vector.broadcast %33 : vector<1x32xf32> to vector<2x32xf32>
      %35 = arith.addf %32, %34 : vector<2x32xf32>
      %c0_21 = arith.constant 0 : index
      %c0_22 = arith.constant 0 : index
      %36 = vector.load %arg5[%c0_21, %c0_22] : memref<32x128xf32, #tpu.memory_space<vmem>>, vector<32x128xf32>
      %cst_23 = arith.constant dense<0.000000e+00> : vector<2x128xf32>
      %37 = tpu.matmul %35, %36, %cst_23 {dimension_numbers = #tpu.dot_dimension_numbers<[1], [0], [0], [1], [0, 0, 1, 1], [], []>} : vector<2x32xf32>, vector<32x128xf32>, vector<2x128xf32> -> vector<2x128xf32>
      %c0_24 = arith.constant 0 : index
      %c0_25 = arith.constant 0 : index
      %38 = vector.load %arg6[%c0_24, %c0_25] : memref<1x128xf32, #tpu.memory_space<vmem>>, vector<1x128xf32>
      %39 = vector.broadcast %38 : vector<1x128xf32> to vector<2x128xf32>
      %40 = arith.addf %37, %39 : vector<2x128xf32>
      %c0_26 = arith.constant 0 : index
      %c0_27 = arith.constant 0 : index
      %41 = vector.load %arg7[%c0_26, %c0_27] : memref<2x128xf32, #tpu.memory_space<vmem>>, vector<2x128xf32>
      tpu.vector_store %arg7[%c0_26, %c0_27], %40 {strides = array<i32>} : memref<2x128xf32, #tpu.memory_space<vmem>>, vector<2x128xf32>,
    } else {
    }
    return
  }
  func.func @transform_0(%arg0: i32, %arg1: i32) -> (i32, i32, i32) {
    %c0_i32 = arith.constant 0 : i32
    %c0_i32_0 = arith.constant 0 : i32
    return %arg0, %arg1, %c0_i32 : i32, i32, i32
  }
  func.func @transform_1(%arg0: i32, %arg1: i32) -> (i32, i32) {
    %c0_i32 = arith.constant 0 : i32
    %c0_i32_0 = arith.constant 0 : i32
    %c0_i32_1 = arith.constant 0 : i32
    return %c0_i32, %c0_i32_0 : i32, i32
  }
  func.func @transform_2(%arg0: i32, %arg1: i32) -> (i32, i32) {
    %c0_i32 = arith.constant 0 : i32
    %c0_i32_0 = arith.constant 0 : i32
    %c0_i32_1 = arith.constant 0 : i32
    return %c0_i32, %c0_i32_0 : i32, i32
  }
  func.func @transform_3(%arg0: i32, %arg1: i32) -> (i32, i32) {
    %c0_i32 = arith.constant 0 : i32
    %c0_i32_0 = arith.constant 0 : i32
    %c0_i32_1 = arith.constant 0 : i32
    return %c0_i32, %c0_i32_0 : i32, i32
  }
  func.func @transform_4(%arg0: i32, %arg1: i32) -> (i32, i32) {
    %c0_i32 = arith.constant 0 : i32
    %c0_i32_0 = arith.constant 0 : i32
    %c0_i32_1 = arith.constant 0 : i32
    return %c0_i32, %c0_i32_0 : i32, i32
  }
  func.func @transform_5(%arg0: i32, %arg1: i32) -> (i32, i32) {
    %c0_i32 = arith.constant 0 : i32
    %c0_i32_0 = arith.constant 0 : i32
    return %arg0, %c0_i32 : i32, i32
  }
}

module attributes {stable_mosaic.version = 11 : i64} {
  func.func @classifier_head_kernel(%arg0: i32, %arg1: i32, %arg2: memref<2x8x32xf32, #tpu.memory_space<vmem>>, %arg3: memref<1x32xf32, #tpu.memory_space<vmem>>, %arg4: memref<1x32xf32, #tpu.memory_space<vmem>>, %arg5: memref<32x128xf32, #tpu.memory_space<vmem>>, %arg6: memref<1x128xf32, #tpu.memory_space<vmem>>, %arg7: memref<2x128xf32, #tpu.memory_space<vmem>>, %arg8: memref<2x32xf32, #tpu.memory_space<vmem>>) attributes {dimension_semantics = [#tpu.dimension_semantics<parallel>, #tpu.dimension_semantics<arbitrary>], iteration_bounds = array<i64: 1, 1>, scalar_prefetch = 0 : i64, scratch_operands = 1 : i64, tpu.core_type = #tpu.core_type<tc>, window_params = [{transform_indices = @transform_0, window_bounds = array<i64: 2, 8, 32>}, {pipeline_mode = #tpu.pipeline_mode<synchronous>, transform_indices = @transform_1, window_bounds = array<i64: 1, 32>}, {pipeline_mode = #tpu.pipeline_mode<synchronous>, transform_indices = @transform_2, window_bounds = array<i64: 1, 32>}, {pipeline_mode = #tpu.pipeline_mode<synchronous>, transform_indices = @transform_3, window_bounds = array<i64: 32, 128>}, {pipeline_mode = #tpu.pipeline_mode<synchronous>, transform_indices = @transform_4, window_bounds = array<i64: 1, 128>}, {transform_indices = @transform_5, window_bounds = array<i64: 2, 128>}]} {
    %c0_i32 = arith.constant 0 : i32
    %0 = arith.cmpi eq, %arg1, %c0_i32 : i32
    %1 = arith.extui %0 : i1 to i32
    %c0_i32_0 = arith.constant 0 : i32
    %2 = arith.cmpi ne, %1, %c0_i32_0 : i32
    scf.if %2 {
      %cst_9 = arith.constant 0.000000e+00 : f32
      %11 = vector.broadcast %cst_9 : f32 to vector<2x32xf32>
      %c0_10 = arith.constant 0 : index
      %c0_11 = arith.constant 0 : index
      %12 = vector.load %arg8[%c0_10, %c0_11] : memref<2x32xf32, #tpu.memory_space<vmem>>, vector<2x32xf32>
      tpu.vector_store %arg8[%c0_10, %c0_11], %11 {strides = array<i32>} : memref<2x32xf32, #tpu.memory_space<vmem>>, vector<2x32xf32>,
    } else {
    }
    %c0 = arith.constant 0 : index
    %c0_1 = arith.constant 0 : index
    %3 = vector.load %arg8[%c0, %c0_1] : memref<2x32xf32, #tpu.memory_space<vmem>>, vector<2x32xf32>
    %c0_2 = arith.constant 0 : index
    %c0_3 = arith.constant 0 : index
    %c0_4 = arith.constant 0 : index
    %4 = vector.load %arg2[%c0_2, %c0_3, %c0_4] : memref<2x8x32xf32, #tpu.memory_space<vmem>>, vector<2x8x32xf32>
    %cst = arith.constant dense<0.000000e+00> : vector<2x32xf32>
    %5 = vector.multi_reduction <add>, %4, %cst [1] : vector<2x8x32xf32> to vector<2x32xf32>
    %6 = arith.addf %3, %5 : vector<2x32xf32>
    %c0_5 = arith.constant 0 : index
    %c0_6 = arith.constant 0 : index
    %7 = vector.load %arg8[%c0_5, %c0_6] : memref<2x32xf32, #tpu.memory_space<vmem>>, vector<2x32xf32>
    tpu.vector_store %arg8[%c0_5, %c0_6], %6 {strides = array<i32>} : memref<2x32xf32, #tpu.memory_space<vmem>>, vector<2x32xf32>,
    %c0_i32_7 = arith.constant 0 : i32
    %8 = arith.cmpi eq, %arg1, %c0_i32_7 : i32
    %9 = arith.extui %8 : i1 to i32
    %c0_i32_8 = arith.constant 0 : i32
    %10 = arith.cmpi ne, %9, %c0_i32_8 : i32
    scf.if %10 {
      %c0_9 = arith.constant 0 : index
      %c0_10 = arith.constant 0 : index
      %11 = vector.load %arg8[%c0_9, %c0_10] : memref<2x32xf32, #tpu.memory_space<vmem>>, vector<2x32xf32>
      %cst_11 = arith.constant 1.250000e-01 : f32
      %12 = vector.broadcast %cst_11 : f32 to vector<2x32xf32>
      %13 = arith.mulf %11, %12 : vector<2x32xf32>
      %cst_12 = arith.constant dense<0.000000e+00> : vector<2xf32>
      %14 = vector.multi_reduction <add>, %13, %cst_12 [1] : vector<2x32xf32> to vector<2xf32>
      %15 = vector.shape_cast %14 : vector<2xf32> to vector<2x1xf32>
      %cst_13 = arith.constant 3.200000e+01 : f32
      %16 = vector.broadcast %cst_13 : f32 to vector<2x1xf32>
      %17 = arith.divf %15, %16 : vector<2x1xf32>
      %18 = vector.broadcast %17 : vector<2x1xf32> to vector<2x32xf32>
      %19 = arith.subf %13, %18 : vector<2x32xf32>
      %20 = arith.mulf %19, %19 : vector<2x32xf32>
      %cst_14 = arith.constant dense<0.000000e+00> : vector<2xf32>
      %21 = vector.multi_reduction <add>, %20, %cst_14 [1] : vector<2x32xf32> to vector<2xf32>
      %22 = vector.shape_cast %21 : vector<2xf32> to vector<2x1xf32>
      %cst_15 = arith.constant 3.200000e+01 : f32
      %23 = vector.broadcast %cst_15 : f32 to vector<2x1xf32>
      %24 = arith.divf %22, %23 : vector<2x1xf32>
      %cst_16 = arith.constant 9.99999974E-6 : f32
      %25 = vector.broadcast %cst_16 : f32 to vector<2x1xf32>
      %26 = arith.addf %24, %25 : vector<2x1xf32>
      %27 = math.rsqrt %26 : vector<2x1xf32>
      %28 = vector.broadcast %27 : vector<2x1xf32> to vector<2x32xf32>
      %29 = arith.mulf %19, %28 : vector<2x32xf32>
      %c0_17 = arith.constant 0 : index
      %c0_18 = arith.constant 0 : index
      %30 = vector.load %arg3[%c0_17, %c0_18] : memref<1x32xf32, #tpu.memory_space<vmem>>, vector<1x32xf32>
      %31 = vector.broadcast %30 : vector<1x32xf32> to vector<2x32xf32>
      %32 = arith.mulf %29, %31 : vector<2x32xf32>
      %c0_19 = arith.constant 0 : index
      %c0_20 = arith.constant 0 : index
      %33 = vector.load %arg4[%c0_19, %c0_20] : memref<1x32xf32, #tpu.memory_space<vmem>>, vector<1x32xf32>
      %34 = vector.broadcast %33 : vector<1x32xf32> to vector<2x32xf32>
      %35 = arith.addf %32, %34 : vector<2x32xf32>
      %c0_21 = arith.constant 0 : index
      %c0_22 = arith.constant 0 : index
      %36 = vector.load %arg5[%c0_21, %c0_22] : memref<32x128xf32, #tpu.memory_space<vmem>>, vector<32x128xf32>
      %cst_23 = arith.constant dense<0.000000e+00> : vector<2x128xf32>
      %37 = tpu.matmul %35, %36, %cst_23 {dimension_numbers = #tpu.dot_dimension_numbers<[1], [0], [0], [1], [0, 0, 1, 1], [], []>} : vector<2x32xf32>, vector<32x128xf32>, vector<2x128xf32> -> vector<2x128xf32>
      %c0_24 = arith.constant 0 : index
      %c0_25 = arith.constant 0 : index
      %38 = vector.load %arg6[%c0_24, %c0_25] : memref<1x128xf32, #tpu.memory_space<vmem>>, vector<1x128xf32>
      %39 = vector.broadcast %38 : vector<1x128xf32> to vector<2x128xf32>
      %40 = arith.addf %37, %39 : vector<2x128xf32>
      %c0_26 = arith.constant 0 : index
      %c0_27 = arith.constant 0 : index
      %41 = vector.load %arg7[%c0_26, %c0_27] : memref<2x128xf32, #tpu.memory_space<vmem>>, vector<2x128xf32>
      tpu.vector_store %arg7[%c0_26, %c0_27], %40 {strides = array<i32>} : memref<2x128xf32, #tpu.memory_space<vmem>>, vector<2x128xf32>,
    } else {
    }
    return
  }
  func.func @transform_0(%arg0: i32, %arg1: i32) -> (i32, i32, i32) {
    %c0_i32 = arith.constant 0 : i32
    %c0_i32_0 = arith.constant 0 : i32
    return %arg0, %arg1, %c0_i32 : i32, i32, i32
  }
  func.func @transform_1(%arg0: i32, %arg1: i32) -> (i32, i32) {
    %c0_i32 = arith.constant 0 : i32
    %c0_i32_0 = arith.constant 0 : i32
    %c0_i32_1 = arith.constant 0 : i32
    return %c0_i32, %c0_i32_0 : i32, i32
  }
  func.func @transform_2(%arg0: i32, %arg1: i32) -> (i32, i32) {
    %c0_i32 = arith.constant 0 : i32
    %c0_i32_0 = arith.constant 0 : i32
    %c0_i32_1 = arith.constant 0 : i32
    return %c0_i32, %c0_i32_0 : i32, i32
  }
  func.func @transform_3(%arg0: i32, %arg1: i32) -> (i32, i32) {
    %c0_i32 = arith.constant 0 : i32
    %c0_i32_0 = arith.constant 0 : i32
    %c0_i32_1 = arith.constant 0 : i32
    return %c0_i32, %c0_i32_0 : i32, i32
  }
  func.func @transform_4(%arg0: i32, %arg1: i32) -> (i32, i32) {
    %c0_i32 = arith.constant 0 : i32
    %c0_i32_0 = arith.constant 0 : i32
    %c0_i32_1 = arith.constant 0 : i32
    return %c0_i32, %c0_i32_0 : i32, i32
  }
  func.func @transform_5(%arg0: i32, %arg1: i32) -> (i32, i32) {
    %c0_i32 = arith.constant 0 : i32
    %c0_i32_0 = arith.constant 0 : i32
    return %arg0, %c0_i32 : i32, i32
  }
}

</mosaic_0001>

<llo_original>
// kernel: tpu_custom_call.1
$region0: #{tpu_custom_call.1}
  #allocation0 [shape = 'u32[]', space=smem, size = 0x4, offset = 0x4, fixed_abs, tag = 'smem constant byte address 0x4 - core index']
  #allocation1 [shape = 'u32[144,128]{1,0:T(1,128)}', space=vmem, size = 0x12000, scoped, tag = 'internal scratch']
  #allocation2 [shape = 'f32[2,32]{1,0:T(2,128)}', space=vmem, size = 0x400, scoped, tag = 'scratch operand']
  %s0 = inlined_call_operand.hbm [shape: f32[2,8,32], index: 0, kind: input, shape index: {}]
  %s1 = inlined_call_operand.vmem [shape: f32[1,32], index: 1, kind: input, shape index: {}]
  %s2 = inlined_call_operand.vmem [shape: f32[1,32], index: 2, kind: input, shape index: {}]
  %s3 = inlined_call_operand.hbm [shape: f32[32,128], index: 3, kind: input, shape index: {}]
  %s4 = inlined_call_operand.vmem [shape: f32[1,128], index: 4, kind: input, shape index: {}]
  %s5 = inlined_call_operand.hbm [shape: f32[2,128], index: 5, kind: output, shape index: {}]
  %s6 = sld [smem:[#allocation0]]
  $region46: #{tpu_custom_call.1} parent=0
    _
  %s8 = ssub.s32 1, %s6
  %s9 = scalar_select 0, %s8, %s6
  $region1: #{tpu_custom_call.1} parent=0
    #allocation3 [shape = 'u8[8192]{0}', space=vmem, size = 0x2000, scoped, tag = 'input window, operand 0, single buffered']
    #allocation4 [shape = 's32[1]{0}', space=sflag, size = 0x4, scoped, tag = 'scoped memory for tpu_custom_call.1']
    #allocation5 [shape = 's32[1]{0}', space=sflag, size = 0x4, scoped, tag = 'scoped memory for tpu_custom_call.1']
    #allocation6 [shape = 'u8[16384]{0}', space=vmem, size = 0x4000, scoped, tag = 'input window, operand 3, single buffered']
    #allocation7 [shape = 's32[1]{0}', space=sflag, size = 0x4, scoped, tag = 'scoped memory for tpu_custom_call.1']
    #allocation8 [shape = 'u8[1024]{0}', space=vmem, size = 0x400, scoped, tag = 'output window, operand 0, single buffered']
    %10 = vsyncpa [#allocation4], 0
    %11 = vsyncpa [#allocation7], 0
    %12 = vsyncpa [#allocation5], 0
    // Predicated region
    $region2: #{tpu_custom_call.1} parent=1 // pred_check
      _
    $region3: #{tpu_custom_call.1} parent=1 // pred_check_branch
      %14 = sbr.rel (0) target = $region5
    $region4: #{tpu_custom_call.1} parent=1 // pred_region
      %s16 = ssub.s32 256, 256
      %17 = vsyncadd [#allocation4], %s16
      %s18 = sshll.u32 [#allocation3], 4
      %s19 = int_to_ptr.vmem [resolvable:$true] %s18
      %24 = dma.hbm_to_vmem [thread:$0]  %s0, 256, %s19, [#allocation4], 128, 128, 8
    $region5: #{tpu_custom_call.1} parent=1 // pred_fallthru
      _
    // Predicated region
    $region6: #{tpu_custom_call.1} parent=1 // pred_check
      _
    $region7: #{tpu_custom_call.1} parent=1 // pred_check_branch
      %26 = sbr.rel (0) target = $region9
    $region8: #{tpu_custom_call.1} parent=1 // pred_region
      _
    $region9: #{tpu_custom_call.1} parent=1 // pred_fallthru
      _
    // Predicated region
    $region10: #{tpu_custom_call.1} parent=1 // pred_check
      _
    $region11: #{tpu_custom_call.1} parent=1 // pred_check_branch
      %28 = sbr.rel (0) target = $region13
    $region12: #{tpu_custom_call.1} parent=1 // pred_region
      _
    $region13: #{tpu_custom_call.1} parent=1 // pred_fallthru
      _
    // Predicated region
    $region14: #{tpu_custom_call.1} parent=1 // pred_check
      _
    $region15: #{tpu_custom_call.1} parent=1 // pred_check_branch
      %30 = sbr.rel (0) target = $region17
    $region16: #{tpu_custom_call.1} parent=1 // pred_region
      %s32 = ssub.s32 512, 512
      %33 = vsyncadd [#allocation7], %s32
      %s34 = sshll.u32 [#allocation6], 4
      %s35 = int_to_ptr.vmem [resolvable:$true] %s34
      %40 = dma.hbm_to_vmem [thread:$0]  %s3, 512, %s35, [#allocation7], 128, 128, 8
    $region17: #{tpu_custom_call.1} parent=1 // pred_fallthru
      _
    // Predicated region
    $region18: #{tpu_custom_call.1} parent=1 // pred_check
      _
    $region19: #{tpu_custom_call.1} parent=1 // pred_check_branch
      %42 = sbr.rel (0) target = $region21
    $region20: #{tpu_custom_call.1} parent=1 // pred_region
      _
    $region21: #{tpu_custom_call.1} parent=1 // pred_fallthru
      _
    // Predicated region
    $region22: #{tpu_custom_call.1} parent=1 // pred_check
      _
    $region23: #{tpu_custom_call.1} parent=1 // pred_check_branch
      %44 = sbr.rel (0) target = $region25
    $region24: #{tpu_custom_call.1} parent=1 // pred_region
      %45 = dma.done [#allocation4], 256
    $region25: #{tpu_custom_call.1} parent=1 // pred_fallthru
      _
    // Predicated region
    $region26: #{tpu_custom_call.1} parent=1 // pred_check
      _
    $region27: #{tpu_custom_call.1} parent=1 // pred_check_branch
      %47 = sbr.rel (0) target = $region29
    $region28: #{tpu_custom_call.1} parent=1 // pred_region
      %48 = dma.done [#allocation7], 512
    $region29: #{tpu_custom_call.1} parent=1 // pred_fallthru
      _
    %p49 = scmp.eq.s32.totalorder 0, 0
    // Predicated region
    $region30: #{tpu_custom_call.1} parent=1 // pred_check
      %p50 = pneg %p49
    $region31: #{tpu_custom_call.1} parent=1 // pred_check_branch
      %52 = sbr.rel (%p50) target = $region33
    $region32: #{tpu_custom_call.1} parent=1 // pred_region
      %vm53 = vcmask 254976
      %54 = vst.msk [vmem:[#allocation2] sm:$0x3] %vm53, 0.0
    $region33: #{tpu_custom_call.1} parent=1 // pred_fallthru
      _
    %v55 = vld [vmem:[#allocation2] sm:$0x3]
    %v56 = vld [vmem:[#allocation3] sm:$0xff]
    %v57 = vld [vmem:[#allocation3 + $0x8] sm:$0xff]
    %vm58 = vcmask 261120
    %v59 = vsel %vm58, %v56, 0.0
    %v60 = vrot.slane %v59, 4
    %v61 = vadd.f32 %v59, %v60
    %v62 = vrot.slane %v61, 2
    %v63 = vadd.f32 %v61, %v62
    %v64 = vrot.slane %v63, 1
    %v65 = vadd.f32 %v63, %v64
    %v66 = vsel %vm58, %v57, 0.0
    %v67 = vrot.slane %v66, 4
    %v68 = vadd.f32 %v66, %v67
    %v69 = vrot.slane %v68, 2
    %v70 = vadd.f32 %v68, %v69
    %v71 = vrot.slane %v70, 1
    %v72 = vadd.f32 %v70, %v71
    %vm75 = vcmask 1041409
    %v76 = vsel %vm75, %v72, %v65
    %v78 = vadd.f32 %v55, %v76
    %vm79 = vcmask 254976
    %80 = vst.msk [vmem:[#allocation2] sm:$0x3] %vm79, %v78
    // Predicated region
    $region34: #{tpu_custom_call.1} parent=1 // pred_check
      %p81 = pneg %p49
    $region35: #{tpu_custom_call.1} parent=1 // pred_check_branch
      %83 = sbr.rel (%p81) target = $region37
    $region36: #{tpu_custom_call.1} parent=1 // pred_region
      %v84 = vld [vmem:[#allocation2] sm:$0x3]
      %v85 = vmul.f32 %v84, 0.125
      %v86 = vsel %vm79, %v85, 0.0
      %87 = vadd.xlane.f32.xlu0 %v86
      %v88 = vpop.xlane.xlu0 %87
      %v89 = vrcp.pop 32.0
      %v90 = vmul.f32 %v88, %v89
      %v91 = vsub.f32 %v85, %v90
      %v92 = vmul.f32 %v91, %v91
      %v93 = vsel %vm79, %v92, 0.0
      %94 = vadd.xlane.f32.xlu0 %v93
      %v95 = vpop.xlane.xlu0 %94
      %v96 = vmul.f32 %v95, %v89
      %v97 = vadd.f32 %v96, 1e-05
      %v98 = vrsqrt.pop %v97
      %v99 = vmul.f32 %v91, %v98
      %v100 = vld [vmem:[%s1] sm:$0x1]
      %v102 = vlaneseq
      %v103 = vshrl.u32 %v102, 7
      %v104 = vsub.s32 0, %v103
      %v105 = vrot.slane %v100, %v104
      %v107 = vmul.f32 %v99, %v105
      %v108 = vld [vmem:[%s2] sm:$0x1]
      %v110 = vlaneseq
      %v111 = vshrl.u32 %v110, 7
      %v112 = vsub.s32 0, %v111
      %v113 = vrot.slane %v108, %v112
      %v115 = vadd.f32 %v107, %v113
      %v116 = vld [vmem:[#allocation6] sm:$0xff]
      %v117 = vld [vmem:[#allocation6 + $0x8] sm:$0xff]
      %v118 = vld [vmem:[#allocation6 + $0x10] sm:$0xff]
      %v119 = vld [vmem:[#allocation6 + $0x18] sm:$0xff]
      %v120 = vld [vmem:[%s4] sm:$0x1]
      %v122 = vlaneseq
      %v123 = vshrl.u32 %v122, 7
      %v124 = vsub.s32 0, %v123
      %v125 = vrot.slane %v120, %v124
      %v128 = vsel %vm58, %v115, 0
      %130 = vmatprep.subr.mxu0 0.0
      %131 = vmatpush1.msra.mxu0 %v116
      %132 = vmatprep.subr.mxu0 0.0
      %133 = vmatpush1.msra.mxu0 %v117
      %134 = vmatprep.subr.mxu0 0.0
      %135 = vmatpush1.msra.mxu0 %v118
      %136 = vmatprep.subr.mxu0 0.0
      %137 = vmatpush1.msra.mxu0 %v119
      %138 = vmatprep.subr.mxu0 0.0
      %139 = vmatpush1.msra.mxu0 0.0
      %140 = vmatprep.subr.mxu0 0.0
      %141 = vmatpush1.msra.mxu0 0.0
      %142 = vmatprep.subr.mxu0 0.0
      %143 = vmatpush1.msra.mxu0 0.0
      %144 = vmatprep.subr.mxu0 0.0
      %145 = vmatpush1.msra.mxu0 0.0
      %146 = vmatprep.subr.mxu0 0.0
      %147 = vmatpush1.msra.mxu0 0.0
      %148 = vmatprep.subr.mxu0 0.0
      %149 = vmatpush1.msra.mxu0 0.0
      %150 = vmatprep.subr.mxu0 0.0
      %151 = vmatpush1.msra.mxu0 0.0
      %152 = vmatprep.subr.mxu0 0.0
      %153 = vmatpush1.msra.mxu0 0.0
      %154 = vmatprep.subr.mxu0 0.0
      %155 = vmatpush1.msra.mxu0 0.0
      %156 = vmatprep.subr.mxu0 0.0
      %157 = vmatpush1.msra.mxu0 0.0
      %158 = vmatprep.subr.mxu0 0.0
      %159 = vmatpush1.msra.mxu0 0.0
      %160 = vmatprep.subr.mxu0 0.0
      %161 = vmatpush1.msra.mxu0 0.0
      %162 = vmatprep.subr.mxu0 0.0
      %163 = vmatpush1.msra.mxu0 0.0
      %164 = vmatprep.subr.mxu0 0.0
      %165 = vmatpush1.msra.mxu0 0.0
      %166 = vmatprep.subr.mxu0 0.0
      %167 = vmatpush1.msra.mxu0 0.0
      %168 = vmatprep.subr.mxu0 0.0
      %169 = vmatpush1.msra.mxu0 0.0
      %170 = vmatprep.subr.mxu0 0.0
      %171 = vmatpush1.msra.mxu0 0.0
      %172 = vmatprep.subr.mxu0 0.0
      %173 = vmatpush1.msra.mxu0 0.0
      %174 = vmatprep.subr.mxu0 0.0
      %175 = vmatpush1.msra.mxu0 0.0
      %176 = vmatprep.subr.mxu0 0.0
      %177 = vmatpush1.msra.mxu0 0.0
      %178 = vmatprep.subr.mxu0 0.0
      %179 = vmatpush1.msra.mxu0 0.0
      %180 = vmatprep.subr.mxu0 0.0
      %181 = vmatpush1.msra.mxu0 0.0
      %182 = vmatprep.subr.mxu0 0.0
      %183 = vmatpush1.msra.mxu0 0.0
      %184 = vmatprep.subr.mxu0 0.0
      %185 = vmatpush1.msra.mxu0 0.0
      %186 = vmatprep.subr.mxu0 0.0
      %187 = vmatpush1.msra.mxu0 0.0
      %188 = vmatprep.subr.mxu0 0.0
      %189 = vmatpush1.msra.mxu0 0.0
      %190 = vmatprep.subr.mxu0 0.0
      %191 = vmatpush1.msra.mxu0 0.0
      %192 = vmatprep.subr.mxu0 0.0
      %193 = vmatpush1.msra.mxu0 0.0
      %194 = vmatprep.mubr.f32.mxu0 0.0
      %195 = vmatmul.mubr.f32.gmra.mrb[0].mxu0 %v128
      %v196 = vpop.f32.mrb[0].mxu0
      %v197 = vadd.f32 %v125, %v196
      %v198 = vpop.f32.mrb[0].mxu0
      %199 = vdwg.mxu0
      %200 = vst [vmem:[#allocation8] sm:$0x3] %v197
    $region37: #{tpu_custom_call.1} parent=1 // pred_fallthru
      _
    // Predicated region
    $region38: #{tpu_custom_call.1} parent=1 // pred_check
      _
    $region39: #{tpu_custom_call.1} parent=1 // pred_check_branch
      %202 = sbr.rel (0) target = $region41
    $region40: #{tpu_custom_call.1} parent=1 // pred_region
      %s204 = ssub.s32 32, 32
      %205 = vsyncadd [#allocation5], %s204
      %s207 = sshll.u32 [#allocation8], 4
      %s208 = int_to_ptr.vmem [resolvable:$true] %s207
      %210 = dma.vmem_to_hbm [thread:$0]  %s208, 32, %s5, [#allocation5]
    $region41: #{tpu_custom_call.1} parent=1 // pred_fallthru
      _
    // Predicated region
    $region42: #{tpu_custom_call.1} parent=1 // pred_check
      _
    $region43: #{tpu_custom_call.1} parent=1 // pred_check_branch
      %212 = sbr.rel (0) target = $region45
    $region44: #{tpu_custom_call.1} parent=1 // pred_region
      %213 = dma.done [#allocation5], 32
    $region45: #{tpu_custom_call.1} parent=1 // pred_fallthru
      _
    %214 = vsyncpa [#allocation4], 1
    %215 = vsyncpa [#allocation7], 1
    %216 = vsyncpa [#allocation5], 1

// kernel: tpu_custom_call.1
$region0: #{tpu_custom_call.1}
  #allocation0 [shape = 'u32[]', space=smem, size = 0x4, offset = 0x4, fixed_abs, tag = 'smem constant byte address 0x4 - core index']
  #allocation1 [shape = 'u32[144,128]{1,0:T(1,128)}', space=vmem, size = 0x12000, scoped, tag = 'internal scratch']
  #allocation2 [shape = 'f32[2,32]{1,0:T(2,128)}', space=vmem, size = 0x400, scoped, tag = 'scratch operand']
  %s0 = inlined_call_operand.hbm [shape: f32[2,8,32], index: 0, kind: input, shape index: {}]
  %s1 = inlined_call_operand.vmem [shape: f32[1,32], index: 1, kind: input, shape index: {}]
  %s2 = inlined_call_operand.vmem [shape: f32[1,32], index: 2, kind: input, shape index: {}]
  %s3 = inlined_call_operand.hbm [shape: f32[32,128], index: 3, kind: input, shape index: {}]
  %s4 = inlined_call_operand.vmem [shape: f32[1,128], index: 4, kind: input, shape index: {}]
  %s5 = inlined_call_operand.hbm [shape: f32[2,128], index: 5, kind: output, shape index: {}]
  %s6 = sld [smem:[#allocation0]]
  $region46: #{tpu_custom_call.1} parent=0
    _
  %s8 = ssub.s32 1, %s6
  %s9 = scalar_select 0, %s8, %s6
  $region1: #{tpu_custom_call.1} parent=0
    #allocation3 [shape = 'u8[8192]{0}', space=vmem, size = 0x2000, scoped, tag = 'input window, operand 0, single buffered']
    #allocation4 [shape = 's32[1]{0}', space=sflag, size = 0x4, scoped, tag = 'scoped memory for tpu_custom_call.1']
    #allocation5 [shape = 's32[1]{0}', space=sflag, size = 0x4, scoped, tag = 'scoped memory for tpu_custom_call.1']
    #allocation6 [shape = 'u8[16384]{0}', space=vmem, size = 0x4000, scoped, tag = 'input window, operand 3, single buffered']
    #allocation7 [shape = 's32[1]{0}', space=sflag, size = 0x4, scoped, tag = 'scoped memory for tpu_custom_call.1']
    #allocation8 [shape = 'u8[1024]{0}', space=vmem, size = 0x400, scoped, tag = 'output window, operand 0, single buffered']
    %10 = vsyncpa [#allocation4], 0
    %11 = vsyncpa [#allocation7], 0
    %12 = vsyncpa [#allocation5], 0
    // Predicated region
    $region2: #{tpu_custom_call.1} parent=1 // pred_check
      _
    $region3: #{tpu_custom_call.1} parent=1 // pred_check_branch
      %14 = sbr.rel (0) target = $region5
    $region4: #{tpu_custom_call.1} parent=1 // pred_region
      %s16 = ssub.s32 256, 256
      %17 = vsyncadd [#allocation4], %s16
      %s18 = sshll.u32 [#allocation3], 4
      %s19 = int_to_ptr.vmem [resolvable:$true] %s18
      %24 = dma.hbm_to_vmem [thread:$0]  %s0, 256, %s19, [#allocation4], 128, 128, 8
    $region5: #{tpu_custom_call.1} parent=1 // pred_fallthru
      _
    // Predicated region
    $region6: #{tpu_custom_call.1} parent=1 // pred_check
      _
    $region7: #{tpu_custom_call.1} parent=1 // pred_check_branch
      %26 = sbr.rel (0) target = $region9
    $region8: #{tpu_custom_call.1} parent=1 // pred_region
      _
    $region9: #{tpu_custom_call.1} parent=1 // pred_fallthru
      _
    // Predicated region
    $region10: #{tpu_custom_call.1} parent=1 // pred_check
      _
    $region11: #{tpu_custom_call.1} parent=1 // pred_check_branch
      %28 = sbr.rel (0) target = $region13
    $region12: #{tpu_custom_call.1} parent=1 // pred_region
      _
    $region13: #{tpu_custom_call.1} parent=1 // pred_fallthru
      _
    // Predicated region
    $region14: #{tpu_custom_call.1} parent=1 // pred_check
      _
    $region15: #{tpu_custom_call.1} parent=1 // pred_check_branch
      %30 = sbr.rel (0) target = $region17
    $region16: #{tpu_custom_call.1} parent=1 // pred_region
      %s32 = ssub.s32 512, 512
      %33 = vsyncadd [#allocation7], %s32
      %s34 = sshll.u32 [#allocation6], 4
      %s35 = int_to_ptr.vmem [resolvable:$true] %s34
      %40 = dma.hbm_to_vmem [thread:$0]  %s3, 512, %s35, [#allocation7], 128, 128, 8
    $region17: #{tpu_custom_call.1} parent=1 // pred_fallthru
      _
    // Predicated region
    $region18: #{tpu_custom_call.1} parent=1 // pred_check
      _
    $region19: #{tpu_custom_call.1} parent=1 // pred_check_branch
      %42 = sbr.rel (0) target = $region21
    $region20: #{tpu_custom_call.1} parent=1 // pred_region
      _
    $region21: #{tpu_custom_call.1} parent=1 // pred_fallthru
      _
    // Predicated region
    $region22: #{tpu_custom_call.1} parent=1 // pred_check
      _
    $region23: #{tpu_custom_call.1} parent=1 // pred_check_branch
      %44 = sbr.rel (0) target = $region25
    $region24: #{tpu_custom_call.1} parent=1 // pred_region
      %45 = dma.done [#allocation4], 256
    $region25: #{tpu_custom_call.1} parent=1 // pred_fallthru
      _
    // Predicated region
    $region26: #{tpu_custom_call.1} parent=1 // pred_check
      _
    $region27: #{tpu_custom_call.1} parent=1 // pred_check_branch
      %47 = sbr.rel (0) target = $region29
    $region28: #{tpu_custom_call.1} parent=1 // pred_region
      %48 = dma.done [#allocation7], 512
    $region29: #{tpu_custom_call.1} parent=1 // pred_fallthru
      _
    %p49 = scmp.eq.s32.totalorder 0, 0
    // Predicated region
    $region30: #{tpu_custom_call.1} parent=1 // pred_check
      %p50 = pneg %p49
    $region31: #{tpu_custom_call.1} parent=1 // pred_check_branch
      %52 = sbr.rel (%p50) target = $region33
    $region32: #{tpu_custom_call.1} parent=1 // pred_region
      %vm53 = vcmask 254976
      %54 = vst.msk [vmem:[#allocation2] sm:$0x3] %vm53, 0.0
    $region33: #{tpu_custom_call.1} parent=1 // pred_fallthru
      _
    %v55 = vld [vmem:[#allocation2] sm:$0x3]
    %v56 = vld [vmem:[#allocation3] sm:$0xff]
    %v57 = vld [vmem:[#allocation3 + $0x8] sm:$0xff]
    %vm58 = vcmask 261120
    %v59 = vsel %vm58, %v56, 0.0
    %v60 = vrot.slane %v59, 4
    %v61 = vadd.f32 %v59, %v60
    %v62 = vrot.slane %v61, 2
    %v63 = vadd.f32 %v61, %v62
    %v64 = vrot.slane %v63, 1
    %v65 = vadd.f32 %v63, %v64
    %v66 = vsel %vm58, %v57, 0.0
    %v67 = vrot.slane %v66, 4
    %v68 = vadd.f32 %v66, %v67
    %v69 = vrot.slane %v68, 2
    %v70 = vadd.f32 %v68, %v69
    %v71 = vrot.slane %v70, 1
    %v72 = vadd.f32 %v70, %v71
    %vm75 = vcmask 1041409
    %v76 = vsel %vm75, %v72, %v65
    %v78 = vadd.f32 %v55, %v76
    %vm79 = vcmask 254976
    %80 = vst.msk [vmem:[#allocation2] sm:$0x3] %vm79, %v78
    // Predicated region
    $region34: #{tpu_custom_call.1} parent=1 // pred_check
      %p81 = pneg %p49
    $region35: #{tpu_custom_call.1} parent=1 // pred_check_branch
      %83 = sbr.rel (%p81) target = $region37
    $region36: #{tpu_custom_call.1} parent=1 // pred_region
      %v84 = vld [vmem:[#allocation2] sm:$0x3]
      %v85 = vmul.f32 %v84, 0.125
      %v86 = vsel %vm79, %v85, 0.0
      %87 = vadd.xlane.f32.xlu0 %v86
      %v88 = vpop.xlane.xlu0 %87
      %v89 = vrcp.pop 32.0
      %v90 = vmul.f32 %v88, %v89
      %v91 = vsub.f32 %v85, %v90
      %v92 = vmul.f32 %v91, %v91
      %v93 = vsel %vm79, %v92, 0.0
      %94 = vadd.xlane.f32.xlu0 %v93
      %v95 = vpop.xlane.xlu0 %94
      %v96 = vmul.f32 %v95, %v89
      %v97 = vadd.f32 %v96, 1e-05
      %v98 = vrsqrt.pop %v97
      %v99 = vmul.f32 %v91, %v98
      %v100 = vld [vmem:[%s1] sm:$0x1]
      %v102 = vlaneseq
      %v103 = vshrl.u32 %v102, 7
      %v104 = vsub.s32 0, %v103
      %v105 = vrot.slane %v100, %v104
      %v107 = vmul.f32 %v99, %v105
      %v108 = vld [vmem:[%s2] sm:$0x1]
      %v110 = vlaneseq
      %v111 = vshrl.u32 %v110, 7
      %v112 = vsub.s32 0, %v111
      %v113 = vrot.slane %v108, %v112
      %v115 = vadd.f32 %v107, %v113
      %v116 = vld [vmem:[#allocation6] sm:$0xff]
      %v117 = vld [vmem:[#allocation6 + $0x8] sm:$0xff]
      %v118 = vld [vmem:[#allocation6 + $0x10] sm:$0xff]
      %v119 = vld [vmem:[#allocation6 + $0x18] sm:$0xff]
      %v120 = vld [vmem:[%s4] sm:$0x1]
      %v122 = vlaneseq
      %v123 = vshrl.u32 %v122, 7
      %v124 = vsub.s32 0, %v123
      %v125 = vrot.slane %v120, %v124
      %v128 = vsel %vm58, %v115, 0
      %130 = vmatprep.subr.mxu0 0.0
      %131 = vmatpush1.msra.mxu0 %v116
      %132 = vmatprep.subr.mxu0 0.0
      %133 = vmatpush1.msra.mxu0 %v117
      %134 = vmatprep.subr.mxu0 0.0
      %135 = vmatpush1.msra.mxu0 %v118
      %136 = vmatprep.subr.mxu0 0.0
      %137 = vmatpush1.msra.mxu0 %v119
      %138 = vmatprep.subr.mxu0 0.0
      %139 = vmatpush1.msra.mxu0 0.0
      %140 = vmatprep.subr.mxu0 0.0
      %141 = vmatpush1.msra.mxu0 0.0
      %142 = vmatprep.subr.mxu0 0.0
      %143 = vmatpush1.msra.mxu0 0.0
      %144 = vmatprep.subr.mxu0 0.0
      %145 = vmatpush1.msra.mxu0 0.0
      %146 = vmatprep.subr.mxu0 0.0
      %147 = vmatpush1.msra.mxu0 0.0
      %148 = vmatprep.subr.mxu0 0.0
      %149 = vmatpush1.msra.mxu0 0.0
      %150 = vmatprep.subr.mxu0 0.0
      %151 = vmatpush1.msra.mxu0 0.0
      %152 = vmatprep.subr.mxu0 0.0
      %153 = vmatpush1.msra.mxu0 0.0
      %154 = vmatprep.subr.mxu0 0.0
      %155 = vmatpush1.msra.mxu0 0.0
      %156 = vmatprep.subr.mxu0 0.0
      %157 = vmatpush1.msra.mxu0 0.0
      %158 = vmatprep.subr.mxu0 0.0
      %159 = vmatpush1.msra.mxu0 0.0
      %160 = vmatprep.subr.mxu0 0.0
      %161 = vmatpush1.msra.mxu0 0.0
      %162 = vmatprep.subr.mxu0 0.0
      %163 = vmatpush1.msra.mxu0 0.0
      %164 = vmatprep.subr.mxu0 0.0
      %165 = vmatpush1.msra.mxu0 0.0
      %166 = vmatprep.subr.mxu0 0.0
      %167 = vmatpush1.msra.mxu0 0.0
      %168 = vmatprep.subr.mxu0 0.0
      %169 = vmatpush1.msra.mxu0 0.0
      %170 = vmatprep.subr.mxu0 0.0
      %171 = vmatpush1.msra.mxu0 0.0
      %172 = vmatprep.subr.mxu0 0.0
      %173 = vmatpush1.msra.mxu0 0.0
      %174 = vmatprep.subr.mxu0 0.0
      %175 = vmatpush1.msra.mxu0 0.0
      %176 = vmatprep.subr.mxu0 0.0
      %177 = vmatpush1.msra.mxu0 0.0
      %178 = vmatprep.subr.mxu0 0.0
      %179 = vmatpush1.msra.mxu0 0.0
      %180 = vmatprep.subr.mxu0 0.0
      %181 = vmatpush1.msra.mxu0 0.0
      %182 = vmatprep.subr.mxu0 0.0
      %183 = vmatpush1.msra.mxu0 0.0
      %184 = vmatprep.subr.mxu0 0.0
      %185 = vmatpush1.msra.mxu0 0.0
      %186 = vmatprep.subr.mxu0 0.0
      %187 = vmatpush1.msra.mxu0 0.0
      %188 = vmatprep.subr.mxu0 0.0
      %189 = vmatpush1.msra.mxu0 0.0
      %190 = vmatprep.subr.mxu0 0.0
      %191 = vmatpush1.msra.mxu0 0.0
      %192 = vmatprep.subr.mxu0 0.0
      %193 = vmatpush1.msra.mxu0 0.0
      %194 = vmatprep.mubr.f32.mxu0 0.0
      %195 = vmatmul.mubr.f32.gmra.mrb[0].mxu0 %v128
      %v196 = vpop.f32.mrb[0].mxu0
      %v197 = vadd.f32 %v125, %v196
      %v198 = vpop.f32.mrb[0].mxu0
      %199 = vdwg.mxu0
      %200 = vst [vmem:[#allocation8] sm:$0x3] %v197
    $region37: #{tpu_custom_call.1} parent=1 // pred_fallthru
      _
    // Predicated region
    $region38: #{tpu_custom_call.1} parent=1 // pred_check
      _
    $region39: #{tpu_custom_call.1} parent=1 // pred_check_branch
      %202 = sbr.rel (0) target = $region41
    $region40: #{tpu_custom_call.1} parent=1 // pred_region
      %s204 = ssub.s32 32, 32
      %205 = vsyncadd [#allocation5], %s204
      %s207 = sshll.u32 [#allocation8], 4
      %s208 = int_to_ptr.vmem [resolvable:$true] %s207
      %210 = dma.vmem_to_hbm [thread:$0]  %s208, 32, %s5, [#allocation5]
    $region41: #{tpu_custom_call.1} parent=1 // pred_fallthru
      _
    // Predicated region
    $region42: #{tpu_custom_call.1} parent=1 // pred_check
      _
    $region43: #{tpu_custom_call.1} parent=1 // pred_check_branch
      %212 = sbr.rel (0) target = $region45
    $region44: #{tpu_custom_call.1} parent=1 // pred_region
      %213 = dma.done [#allocation5], 32
    $region45: #{tpu_custom_call.1} parent=1 // pred_fallthru
      _
    %214 = vsyncpa [#allocation4], 1
    %215 = vsyncpa [#allocation7], 1
    %216 = vsyncpa [#allocation5], 1

</llo_original>
